<compile_context>
chip_gen: v7x
topology: tpu7x:2x2x1
jax: 0.10.0
libtpu: 0.0.40
codegen_flags: <defaults>
</compile_context>

<pallas_src>
import functools

import jax
import jax.numpy as jnp
from jax import lax
from jax.experimental import pallas as pl
from jax.experimental.pallas import tpu as pltpu

LANES = 128
SUBLANES = 8
GROUP = SUBLANES * LANES               # 1024 elements = one f32 vreg
TARGET_BLOCK_BYTES = 2 * 1024 * 1024   # per input per grid step


def _sse_partial_kernel(recon_ref, x_ref, out_ref, *, groups_full, groups_last):
    """Sum-of-squared-diffs of one (groups, 8, 128) block -> (8, 128) partial."""

    def accum(n_groups):
        def body(g, acc):
            # Cast in-kernel so bf16 inputs are never upcast/copied in HBM.
            r = recon_ref[g].astype(jnp.float32)
            t = x_ref[g].astype(jnp.float32)
            d = r - t
            return acc + d * d

        init = jnp.zeros((SUBLANES, LANES), jnp.float32)
        return lax.fori_loop(0, n_groups, body, init,
                             unroll=min(8, max(n_groups, 1)))

    if groups_last == groups_full:
        # Every block is full: single unconditional path.
        out_ref[...] = accum(groups_full)
    else:
        # Only the last block is ragged; it skips the out-of-bounds groups
        # entirely (no per-element mask anywhere).
        last = pl.num_programs(0) - 1

        @pl.when(pl.program_id(0) != last)
        def _():
            out_ref[...] = accum(groups_full)

        @pl.when(pl.program_id(0) == last)
        def _():
            out_ref[...] = accum(groups_last)


def vae_loss(recon_x, x, mu, logvar):
    # KL term: tiny reduction, keep it out of the kernel entirely.
    mu32 = mu.astype(jnp.float32)
    lv32 = logvar.astype(jnp.float32)
    kld = -0.5 * jnp.sum(1.0 + lv32 - mu32 * mu32 - jnp.exp(lv32))

    recon_flat = recon_x.reshape(-1)
    x_flat = x.reshape(-1)
    n = recon_flat.shape[0]

    n_main = (n // GROUP) * GROUP
    total_groups = n_main // GROUP

    # Tail (< 1024 elements): plain jnp in the wrapper, no jnp.pad HBM copies.
    sse_tail = 0.0
    if n_main != n:
        dt = (recon_flat[n_main:].astype(jnp.float32)
              - x_flat[n_main:].astype(jnp.float32))
        sse_tail = jnp.sum(dt * dt)

    if total_groups == 0:
        return sse_tail + kld

    recon_slab = recon_flat[:n_main].reshape(total_groups, SUBLANES, LANES)
    x_slab = x_flat[:n_main].reshape(total_groups, SUBLANES, LANES)

    # Block sizing: ~2 MiB per input per block (512 groups f32 / 1024 bf16),
    # and guarantee >= 2 blocks whenever possible so v7x's two TensorCores
    # both get work from the "parallel" grid axis.
    itemsize = max(recon_slab.dtype.itemsize, x_slab.dtype.itemsize)
    target_groups = max(1, TARGET_BLOCK_BYTES // (GROUP * itemsize))
    if total_groups > target_groups:
        groups_per_block = target_groups
    elif total_groups >= 2:
        groups_per_block = pl.cdiv(total_groups, 2)
    else:
        groups_per_block = total_groups

    num_blocks = pl.cdiv(total_groups, groups_per_block)
    groups_last = total_groups - (num_blocks - 1) * groups_per_block

    kernel = functools.partial(
        _sse_partial_kernel,
        groups_full=groups_per_block,
        groups_last=groups_last,
    )

    partials = pl.pallas_call(
        kernel,
        out_shape=jax.ShapeDtypeStruct((num_blocks, SUBLANES, LANES), jnp.float32),
        grid_spec=pltpu.PrefetchScalarGridSpec(
            num_scalar_prefetch=0,
            grid=(num_blocks,),
            in_specs=[
                pl.BlockSpec((groups_per_block, SUBLANES, LANES),
                             lambda i: (i, 0, 0)),
                pl.BlockSpec((groups_per_block, SUBLANES, LANES),
                             lambda i: (i, 0, 0)),
            ],
            out_specs=pl.BlockSpec((None, SUBLANES, LANES), lambda i: (i, 0, 0)),
        ),
        compiler_params=pltpu.CompilerParams(
            dimension_semantics=("parallel",),
        ),
    )(recon_slab, x_slab)

    sse = jnp.sum(partials)
    return sse + sse_tail + kld


def vae_loss_ref(recon_x, x, mu, logvar):
    mse = jnp.sum((recon_x.astype(jnp.float32) - x.astype(jnp.float32)) ** 2)
    kld = -0.5 * jnp.sum(
        1.0 + logvar.astype(jnp.float32)
        - mu.astype(jnp.float32) ** 2
        - jnp.exp(logvar.astype(jnp.float32))
    )
    return mse + kld


def _check(recon_x, x, mu, logvar, rtol=1e-5, atol=1e-5):
    result = vae_loss(recon_x, x, mu, logvar)
    jax.block_until_ready(result)
    expected = vae_loss_ref(recon_x, x, mu, logvar)
    assert jnp.allclose(result, expected, rtol=rtol, atol=atol), (result, expected)


if __name__ == "__main__":
    key = jax.random.PRNGKey(0)

    # Primary shapes implied by a small VAE: images NCHW, latent (batch, dim).
    k1, k2, k3, k4 = jax.random.split(key, 4)
    recon_x = jax.random.uniform(k1, (2, 4, 16, 16), dtype=jnp.float32)
    x = jax.random.uniform(k2, (2, 4, 16, 16), dtype=jnp.float32)
    mu = jax.random.normal(k3, (2, 32), dtype=jnp.float32) * 0.5
    logvar = jax.random.normal(k4, (2, 32), dtype=jnp.float32) * 0.5
    _check(recon_x, x, mu, logvar)

    # Tiny ragged input (< 1024 elems): pure wrapper path, no kernel needed.
    k5, k6, k7, k8 = jax.random.split(jax.random.PRNGKey(1), 4)
    recon_b = jax.random.uniform(k5, (2, 3, 5, 7), dtype=jnp.float32)
    x_b = jax.random.uniform(k6, (2, 3, 5, 7), dtype=jnp.float32)
    mu_b = jax.random.normal(k7, (2, 8), dtype=jnp.float32) * 0.5
    lv_b = jax.random.normal(k8, (2, 8), dtype=jnp.float32) * 0.5
    _check(recon_b, x_b, mu_b, lv_b)

    # Mid-sized input: exactly divisible, split into 2 even blocks (v7x path).
    k9, k10, k11, k12 = jax.random.split(jax.random.PRNGKey(2), 4)
    recon_c = jax.random.uniform(k9, (2, 8, 96, 96), dtype=jnp.float32)
    x_c = jax.random.uniform(k10, (2, 8, 96, 96), dtype=jnp.float32)
    mu_c = jax.random.normal(k11, (2, 64), dtype=jnp.float32) * 0.5
    lv_c = jax.random.normal(k12, (2, 64), dtype=jnp.float32) * 0.5
    _check(recon_c, x_c, mu_c, lv_c)

    # Ragged last kernel block + wrapper tail (13*1024 + 300 elements).
    k13, k14, k15, k16 = jax.random.split(jax.random.PRNGKey(3), 4)
    recon_d = jax.random.uniform(k13, (13 * 1024 + 300,), dtype=jnp.float32)
    x_d = jax.random.uniform(k14, (13 * 1024 + 300,), dtype=jnp.float32)
    mu_d = jax.random.normal(k15, (4, 16), dtype=jnp.float32) * 0.5
    lv_d = jax.random.normal(k16, (4, 16), dtype=jnp.float32) * 0.5
    _check(recon_d, x_d, mu_d, lv_d)

    # Large input: hits the full 2 MiB-per-input block size (512 groups f32).
    k17, k18, k19, k20 = jax.random.split(jax.random.PRNGKey(4), 4)
    recon_e = jax.random.uniform(k17, (2, 8, 256, 256), dtype=jnp.float32)
    x_e = jax.random.uniform(k18, (2, 8, 256, 256), dtype=jnp.float32)
    mu_e = jax.random.normal(k19, (2, 64), dtype=jnp.float32) * 0.5
    lv_e = jax.random.normal(k20, (2, 64), dtype=jnp.float32) * 0.5
    _check(recon_e, x_e, mu_e, lv_e, rtol=1e-4, atol=1e-2)

    print("KERNEL_OK")
</pallas_src>

<mosaic_0001>
module attributes {stable_mosaic.version = 11 : i64} {
  func.func @_sse_partial_kernel(%arg0: i32, %arg1: memref<1x8x128xf32, #tpu.memory_space<vmem>>, %arg2: memref<1x8x128xf32, #tpu.memory_space<vmem>>, %arg3: memref<1x8x128xf32, #tpu.memory_space<vmem>>) attributes {dimension_semantics = [#tpu.dimension_semantics<parallel>], iteration_bounds = array<i64: 2>, scalar_prefetch = 0 : i64, scratch_operands = 0 : i64, tpu.core_type = #tpu.core_type<tc>, window_params = [{transform_indices = @transform_0, window_bounds = array<i64: 1, 8, 128>}, {transform_indices = @transform_1, window_bounds = array<i64: 1, 8, 128>}, {transform_indices = @transform_2, window_bounds = array<i64: 1, 8, 128>}]} {
    %cst = arith.constant 0.000000e+00 : f32
    %0 = vector.broadcast %cst : f32 to vector<8x128xf32>
    %c0_i32 = arith.constant 0 : i32
    %1 = arith.index_cast %c0_i32 : i32 to index
    %c0 = arith.constant 0 : index
    %c0_0 = arith.constant 0 : index
    %2 = vector.load %arg1[%1, %c0, %c0_0] : memref<1x8x128xf32, #tpu.memory_space<vmem>>, vector<1x8x128xf32>
    %3 = vector.shape_cast %2 : vector<1x8x128xf32> to vector<8x128xf32>
    %4 = arith.index_cast %c0_i32 : i32 to index
    %c0_1 = arith.constant 0 : index
    %c0_2 = arith.constant 0 : index
    %5 = vector.load %arg2[%4, %c0_1, %c0_2] : memref<1x8x128xf32, #tpu.memory_space<vmem>>, vector<1x8x128xf32>
    %6 = vector.shape_cast %5 : vector<1x8x128xf32> to vector<8x128xf32>
    %7 = arith.subf %3, %6 : vector<8x128xf32>
    %8 = arith.mulf %7, %7 : vector<8x128xf32>
    %9 = arith.addf %0, %8 : vector<8x128xf32>
    %c1_i32 = arith.constant 1 : i32
    %c0_3 = arith.constant 0 : index
    %c0_4 = arith.constant 0 : index
    %c0_5 = arith.constant 0 : index
    %10 = vector.load %arg3[%c0_3, %c0_4, %c0_5] : memref<1x8x128xf32, #tpu.memory_space<vmem>>, vector<1x8x128xf32>
    %11 = vector.shape_cast %10 : vector<1x8x128xf32> to vector<8x128xf32>
    %12 = vector.shape_cast %9 : vector<8x128xf32> to vector<1x8x128xf32>
    tpu.vector_store %arg3[%c0_3, %c0_4, %c0_5], %12 {strides = array<i32>} : memref<1x8x128xf32, #tpu.memory_space<vmem>>, vector<1x8x128xf32>,
    return
  }
  func.func @transform_0(%arg0: i32) -> (i32, i32, i32) {
    %c0_i32 = arith.constant 0 : i32
    %c0_i32_0 = arith.constant 0 : i32
    %c0_i32_1 = arith.constant 0 : i32
    return %arg0, %c0_i32, %c0_i32_0 : i32, i32, i32
  }
  func.func @transform_1(%arg0: i32) -> (i32, i32, i32) {
    %c0_i32 = arith.constant 0 : i32
    %c0_i32_0 = arith.constant 0 : i32
    %c0_i32_1 = arith.constant 0 : i32
    return %arg0, %c0_i32, %c0_i32_0 : i32, i32, i32
  }
  func.func @transform_2(%arg0: i32) -> (i32, i32, i32) {
    %c0_i32 = arith.constant 0 : i32
    %c0_i32_0 = arith.constant 0 : i32
    %c0_i32_1 = arith.constant 0 : i32
    return %arg0, %c0_i32, %c0_i32_0 : i32, i32, i32
  }
}

</mosaic_0001>

<llo_original>
// kernel: tpu_custom_call.1
$region0: #{tpu_custom_call.1}
  #allocation0 [shape = 'u32[]', space=smem, size = 0x4, offset = 0x4, fixed_abs, tag = 'smem constant byte address 0x4 - core index']
  #allocation1 [shape = 'u32[144,128]{1,0:T(1,128)}', space=vmem, size = 0x12000, scoped, tag = 'internal scratch']
  %s0 = inlined_call_operand.hbm [shape: f32[2,8,128], index: 0, kind: input, shape index: {}]
  %s1 = inlined_call_operand.hbm [shape: f32[2,8,128], index: 1, kind: input, shape index: {}]
  %s2 = inlined_call_operand.hbm [shape: f32[2,8,128], index: 2, kind: output, shape index: {}]
  %s3 = sld [smem:[#allocation0]]
  $region49: #{tpu_custom_call.1} parent=0
    _
  %s5 = ssub.s32 1, %s3
  %s6 = scalar_select 0, %s5, %s3
  $region1: #{tpu_custom_call.1} parent=0
    #allocation2 [shape = 'u8[8192]{0}', space=vmem, size = 0x2000, scoped, tag = 'input window, operand 0']
    #allocation3 [shape = 's32[2]{0}', space=sflag, size = 0x8, scoped, tag = 'scoped memory for tpu_custom_call.1']
    #allocation4 [shape = 's32[2]{0}', space=sflag, size = 0x8, scoped, tag = 'scoped memory for tpu_custom_call.1']
    #allocation5 [shape = 'u8[8192]{0}', space=vmem, size = 0x2000, scoped, tag = 'input window, operand 1']
    #allocation6 [shape = 's32[2]{0}', space=sflag, size = 0x8, scoped, tag = 'scoped memory for tpu_custom_call.1']
    #allocation7 [shape = 'u8[8192]{0}', space=vmem, size = 0x2000, scoped, tag = 'output window, operand 0']
    %7 = vsyncpa [#allocation3], 0
    %s8 = scalar_lea.sflag [#allocation3], 1
    %9 = vsyncpa %s8, 0
    %10 = vsyncpa [#allocation6], 0
    %s11 = scalar_lea.sflag [#allocation6], 1
    %12 = vsyncpa %s11, 0
    %13 = vsyncpa [#allocation4], 0
    %s14 = scalar_lea.sflag [#allocation4], 1
    %15 = vsyncpa %s14, 0
    loop: start=0, step=1, limit=4
    $region2: #{tpu_custom_call.1} parent=1 // loop_pre_header
      _
    $region3: #{tpu_custom_call.1} parent=1 // loop_header
      %s17 = sphi 0, %s21
      %p18 = scmp.ge.s32.totalorder %s17, 4
      %s27 = sphi 0, %s29
      %s30 = sphi 0, %s27
      %s31 = sphi 0, %s30
      %s47 = sphi 0, %s31
      %s53 = sphi 0, %s55
      %s56 = sphi 0, %s53
      %s57 = sphi 0, %s56
      %s73 = sphi 0, %s57
      %s79 = sphi 0, %s81
      %s82 = sphi 0, %s79
      %s83 = sphi 0, %s82
      %s99 = sphi 0, %s83
    $region4: #{tpu_custom_call.1} parent=1 // loop_header_branch
      %20 = sbr.rel (%p18) target = $region8
    $region5: #{tpu_custom_call.1} parent=1 // loop_body
      %s22 = ssub.s32 %s17, 1
      %s23 = ssub.s32 %s17, 2
      %s24 = sadd.s32 %s17, 1
      %s25 = ssub.s32 %s17, %s24
      %p26 = scmp.eq.s32.totalorder %s25, 0
      %s28 = sadd.s32 %s27, 1
      %s29 = scalar_select %p26, %s27, %s28
      %p32 = pneg %p26
      %p33 = scmp.eq.s32.totalorder %s17, 1
      %p34 = por %p32, %p33
      %p35 = scmp.ne.s32.totalorder %s27, %s30
      %p36 = scmp.eq.s32.totalorder %s17, 0
      %p37 = por %p35, %p36
      %p38 = scmp.ne.s32.totalorder %s27, %s30
      %p39 = scmp.eq.s32.totalorder %s22, 1
      %p40 = por %p38, %p39
      %p41 = scmp.ne.s32.totalorder %s30, %s31
      %p42 = scmp.eq.s32.totalorder %s22, 0
      %p43 = por %p41, %p42
      %p44 = scmp.ne.s32.totalorder %s30, %s31
      %p45 = scmp.eq.s32.totalorder %s23, 1
      %p46 = por %p44, %p45
      %p48 = scmp.ne.s32.totalorder %s31, %s47
      %p49 = scmp.eq.s32.totalorder %s23, 0
      %p50 = por %p48, %p49
      %s51 = ssub.s32 %s17, %s24
      %p52 = scmp.eq.s32.totalorder %s51, 0
      %s54 = sadd.s32 %s53, 1
      %s55 = scalar_select %p52, %s53, %s54
      %p58 = pneg %p52
      %p59 = scmp.eq.s32.totalorder %s17, 1
      %p60 = por %p58, %p59
      %p61 = scmp.ne.s32.totalorder %s53, %s56
      %p62 = scmp.eq.s32.totalorder %s17, 0
      %p63 = por %p61, %p62
      %p64 = scmp.ne.s32.totalorder %s53, %s56
      %p65 = scmp.eq.s32.totalorder %s22, 1
      %p66 = por %p64, %p65
      %p67 = scmp.ne.s32.totalorder %s56, %s57
      %p68 = scmp.eq.s32.totalorder %s22, 0
      %p69 = por %p67, %p68
      %p70 = scmp.ne.s32.totalorder %s56, %s57
      %p71 = scmp.eq.s32.totalorder %s23, 1
      %p72 = por %p70, %p71
      %p74 = scmp.ne.s32.totalorder %s57, %s73
      %p75 = scmp.eq.s32.totalorder %s23, 0
      %p76 = por %p74, %p75
      %s77 = ssub.s32 %s17, %s24
      %p78 = scmp.eq.s32.totalorder %s77, 0
      %s80 = sadd.s32 %s79, 1
      %s81 = scalar_select %p78, %s79, %s80
      %p84 = pneg %p78
      %p85 = scmp.eq.s32.totalorder %s17, 1
      %p86 = por %p84, %p85
      %p87 = scmp.ne.s32.totalorder %s79, %s82
      %p88 = scmp.eq.s32.totalorder %s17, 0
      %p89 = por %p87, %p88
      %p90 = scmp.ne.s32.totalorder %s79, %s82
      %p91 = scmp.eq.s32.totalorder %s22, 1
      %p92 = por %p90, %p91
      %p93 = scmp.ne.s32.totalorder %s82, %s83
      %p94 = scmp.eq.s32.totalorder %s22, 0
      %p95 = por %p93, %p94
      %p96 = scmp.ne.s32.totalorder %s82, %s83
      %p97 = scmp.eq.s32.totalorder %s23, 1
      %p98 = por %p96, %p97
      %p100 = scmp.ne.s32.totalorder %s83, %s99
      %p101 = scmp.eq.s32.totalorder %s23, 0
      %p102 = por %p100, %p101
      %p103 = scmp.le.s32.totalorder 1, %s17
      %p104 = scmp.lt.s32.totalorder %s17, 3
      %p105 = pnand %p103, %p104
      %p106 = pneg %p105
      // Predicated region
      $region9: #{tpu_custom_call.1} parent=5 // pred_check
        _
      $region10: #{tpu_custom_call.1} parent=5 // pred_check_branch
        %108 = sbr.rel (%p105) target = $region12
      $region11: #{tpu_custom_call.1} parent=5 // pred_region
        %s109 = ssub.s32 %s17, 1
      $region12: #{tpu_custom_call.1} parent=5 // pred_fallthru
        _
      %p110 = scmp.lt.s32.totalorder %s17, 2
      // Predicated region
      $region13: #{tpu_custom_call.1} parent=5 // pred_check
        %p111 = pneg %p110
      $region14: #{tpu_custom_call.1} parent=5 // pred_check_branch
        %113 = sbr.rel (%p111) target = $region16
      $region15: #{tpu_custom_call.1} parent=5 // pred_region
        // Predicated region
        $region17: #{tpu_custom_call.1} parent=15 // pred_check
          %p114 = pneg %p37
        $region18: #{tpu_custom_call.1} parent=15 // pred_check_branch
          %116 = sbr.rel (%p114) target = $region20
        $region19: #{tpu_custom_call.1} parent=15 // pred_region
          %s117 = sand.u32 %s27, 1
          %s118 = scalar_lea.sflag [#allocation3], %s117
          %s119 = sand.u32 %s27, 1
          %s120 = smul.addr %s119, 8
          %s121 = scalar_lea.vmem [#allocation2], %s120
          %s123 = ssub.s32 128, 128
          %124 = vsyncadd %s118, %s123
          %s125 = smul.addr %s17, 128
          %s126 = scalar_lea.hbm %s0, %s125
          %s128 = sshll.u32 %s121, 4
          %s129 = int_to_ptr.vmem [resolvable:$true] %s128
          %131 = dma.hbm_to_vmem [thread:$0]  %s126, 128, %s129, %s118
        $region20: #{tpu_custom_call.1} parent=15 // pred_fallthru
          _
        // Predicated region
        $region21: #{tpu_custom_call.1} parent=15 // pred_check
          %p132 = pneg %p63
        $region22: #{tpu_custom_call.1} parent=15 // pred_check_branch
          %134 = sbr.rel (%p132) target = $region24
        $region23: #{tpu_custom_call.1} parent=15 // pred_region
          %s135 = sand.u32 %s53, 1
          %s136 = scalar_lea.sflag [#allocation6], %s135
          %s137 = sand.u32 %s53, 1
          %s138 = smul.addr %s137, 8
          %s139 = scalar_lea.vmem [#allocation5], %s138
          %s141 = ssub.s32 128, 128
          %142 = vsyncadd %s136, %s141
          %s143 = smul.addr %s17, 128
          %s144 = scalar_lea.hbm %s1, %s143
          %s146 = sshll.u32 %s139, 4
          %s147 = int_to_ptr.vmem [resolvable:$true] %s146
          %149 = dma.hbm_to_vmem [thread:$0]  %s144, 128, %s147, %s136
        $region24: #{tpu_custom_call.1} parent=15 // pred_fallthru
          _
      $region16: #{tpu_custom_call.1} parent=5 // pred_fallthru
        _
      %p150 = scmp.le.s32.totalorder 1, %s17
      %p151 = scmp.lt.s32.totalorder %s17, 3
      %p152 = pnand %p150, %p151
      %p153 = pneg %p152
      // Predicated region
      $region25: #{tpu_custom_call.1} parent=5 // pred_check
        _
      $region26: #{tpu_custom_call.1} parent=5 // pred_check_branch
        %155 = sbr.rel (%p152) target = $region28
      $region27: #{tpu_custom_call.1} parent=5 // pred_region
        %s156 = ssub.s32 %s17, 1
        %s157 = sand.u32 %s30, 1
        %s158 = scalar_lea.sflag [#allocation3], %s157
        %s159 = sand.u32 %s30, 1
        %s160 = smul.addr %s159, 8
        %s161 = scalar_lea.vmem [#allocation2], %s160
        // Predicated region
        $region29: #{tpu_custom_call.1} parent=27 // pred_check
          %p162 = pneg %p43
        $region30: #{tpu_custom_call.1} parent=27 // pred_check_branch
          %164 = sbr.rel (%p162) target = $region32
        $region31: #{tpu_custom_call.1} parent=27 // pred_region
          %165 = dma.done %s158, 128
        $region32: #{tpu_custom_call.1} parent=27 // pred_fallthru
          _
        %s166 = sand.u32 %s56, 1
        %s167 = scalar_lea.sflag [#allocation6], %s166
        %s168 = sand.u32 %s56, 1
        %s169 = smul.addr %s168, 8
        %s170 = scalar_lea.vmem [#allocation5], %s169
        // Predicated region
        $region33: #{tpu_custom_call.1} parent=27 // pred_check
          %p171 = pneg %p69
        $region34: #{tpu_custom_call.1} parent=27 // pred_check_branch
          %173 = sbr.rel (%p171) target = $region36
        $region35: #{tpu_custom_call.1} parent=27 // pred_region
          %174 = dma.done %s167, 128
        $region36: #{tpu_custom_call.1} parent=27 // pred_fallthru
          _
        %s175 = sand.u32 %s30, 1
        %s176 = scalar_lea.sflag [#allocation3], %s175
        %s177 = sand.u32 %s30, 1
        %s178 = smul.addr %s177, 8
        %s179 = scalar_lea.vmem [#allocation2], %s178
        %p180 = pneg %p43
        %p181 = pneg %p40
        %s182 = sand.u32 %s56, 1
        %s183 = scalar_lea.sflag [#allocation6], %s182
        %s184 = sand.u32 %s56, 1
        %s185 = smul.addr %s184, 8
        %s186 = scalar_lea.vmem [#allocation5], %s185
        %p187 = pneg %p69
        %p188 = pneg %p66
        %p189 = pneg %p95
        %p190 = pneg %p92
        %s191 = sand.u32 %s82, 1
        %s192 = scalar_lea.sflag [#allocation4], %s191
        %s193 = sand.u32 %s82, 1
        %s194 = smul.addr %s193, 8
        %s195 = scalar_lea.vmem [#allocation7], %s194
        %v196 = vld [vmem:[%s161] sm:$0xff]
        %v197 = vld [vmem:[%s170] sm:$0xff]
        %v198 = vsub.f32 %v196, %v197
        %v199 = vmul.f32 %v198, %v198
        %v200 = vadd.f32 %v199, 0.0
        %201 = vst [vmem:[%s195] sm:$0xff] %v200
        %s202 = sand.u32 %s82, 1
        %s203 = scalar_lea.sflag [#allocation4], %s202
        %s204 = sand.u32 %s82, 1
        %s205 = smul.addr %s204, 8
        %s206 = scalar_lea.vmem [#allocation7], %s205
        // Predicated region
        $region37: #{tpu_custom_call.1} parent=27 // pred_check
          %p207 = pneg %p92
        $region38: #{tpu_custom_call.1} parent=27 // pred_check_branch
          %209 = sbr.rel (%p207) target = $region40
        $region39: #{tpu_custom_call.1} parent=27 // pred_region
          %s211 = ssub.s32 128, 128
          %212 = vsyncadd %s203, %s211
          %s213 = smul.addr %s22, 128
          %s214 = scalar_lea.hbm %s2, %s213
          %s216 = sshll.u32 %s206, 4
          %s217 = int_to_ptr.vmem [resolvable:$true] %s216
          %219 = dma.vmem_to_hbm [thread:$0]  %s217, 128, %s214, %s203
        $region40: #{tpu_custom_call.1} parent=27 // pred_fallthru
          _
      $region28: #{tpu_custom_call.1} parent=5 // pred_fallthru
        _
      %p220 = scmp.le.s32.totalorder 2, %s17
      // Predicated region
      $region41: #{tpu_custom_call.1} parent=5 // pred_check
        %p221 = pneg %p220
      $region42: #{tpu_custom_call.1} parent=5 // pred_check_branch
        %223 = sbr.rel (%p221) target = $region44
      $region43: #{tpu_custom_call.1} parent=5 // pred_region
        %s224 = ssub.s32 %s17, 2
        // Predicated region
        $region45: #{tpu_custom_call.1} parent=43 // pred_check
          %p225 = pneg %p98
        $region46: #{tpu_custom_call.1} parent=43 // pred_check_branch
          %227 = sbr.rel (%p225) target = $region48
        $region47: #{tpu_custom_call.1} parent=43 // pred_region
          %s228 = sand.u32 %s83, 1
          %s229 = scalar_lea.sflag [#allocation4], %s228
          %s230 = sand.u32 %s83, 1
          %s231 = smul.addr %s230, 8
          %s232 = scalar_lea.vmem [#allocation7], %s231
          %233 = dma.done %s229, 128
        $region48: #{tpu_custom_call.1} parent=43 // pred_fallthru
          _
      $region44: #{tpu_custom_call.1} parent=5 // pred_fallthru
        _
    $region6: #{tpu_custom_call.1} parent=1 // loop_footer
      %s21 = sadd.s32 1, %s17
    $region7: #{tpu_custom_call.1} parent=1 // loop_footer_branch
      %16 = sbr.rel target = $region3
    $region8: #{tpu_custom_call.1} parent=1 // loop_exit
      _
    %234 = vsyncpa [#allocation3], 1
    %s235 = scalar_lea.sflag [#allocation3], 1
    %236 = vsyncpa %s235, 1
    %237 = vsyncpa [#allocation6], 1
    %s238 = scalar_lea.sflag [#allocation6], 1
    %239 = vsyncpa %s238, 1
    %240 = vsyncpa [#allocation4], 1
    %s241 = scalar_lea.sflag [#allocation4], 1
    %242 = vsyncpa %s241, 1

</llo_original>
